<compile_context>
chip_gen: v5e
topology: v5e:2x2
jax: 0.10.0
libtpu: 0.0.40
codegen_flags: <defaults>
</compile_context>

<pallas_src>
import functools

import jax
import jax.numpy as jnp
from jax.experimental import pallas as pl
from jax.experimental.pallas import tpu as pltpu


def _round_up(n: int, k: int) -> int:
    return ((n + k - 1) // k) * k


def _vmem_budget_bytes() -> int:
    """Per-generation scoped-VMEM budget (leave headroom for compiler scratch)."""
    try:
        cap = pltpu.get_tpu_info().vmem_capacity_bytes
    except Exception:
        cap = 64 * 1024 * 1024              # conservative fallback (v7x per-TC VMEM)
    return min(cap - 8 * 1024 * 1024, 112 * 1024 * 1024)


def _select_tiling(m: int, d_pad: int, budget: int):
    """Pick (tm, tn): row tile near 512 minimizing padding, widest W slab fitting VMEM."""
    m8 = _round_up(m, 8)

    def vmem_need(tm, tn):
        n_col = d_pad // tn
        w_bufs = 1 if n_col == 1 else 2      # constant-index W is single-buffered
        return (d_pad * tn * 2 * w_bufs      # bf16 W slab(s)
                + tm * d_pad * 4 * 2         # f32 x tile, double-buffered
                + tm * tn * 4 * 2            # f32 out tile, double-buffered
                + tm * d_pad * 2             # bf16 LayerNorm scratch
                + tm * tn * 4                # f32 matmul accumulator / temps
                + tn * 4 * 2)                # effective bias

    # column-tile candidates: multiples of 128 that evenly divide d_pad, largest first
    n128 = d_pad // 128
    tns = sorted({(n128 // k) * 128 for k in range(1, n128 + 1) if n128 % k == 0},
                 reverse=True)
    # row-tile candidates: split m as evenly as possible near each target (min padding)
    tms = []
    for target in (512, 256, 128, 64, 32, 16, 8):
        n_row = max(1, -(-m // target))
        tm = min(m8, _round_up(-(-m // n_row), 8))
        if tm not in tms:
            tms.append(tm)

    for tm in tms:                 # prefer big row tiles (HBM-bound regime) ...
        for tn in tns:             # ... then the widest W slab that fits the budget
            if vmem_need(tm, tn) <= budget:
                return tm, tn
    return tms[-1], tns[-1]


def _residual_kernel(alpha_ref, x_ref, w_ref, beff_ref, o_ref, ln_ref, *, eps, d_real):
    """o = x + dropout(Linear(LayerNorm(x)))   (dropout = eval-mode identity)."""
    j = pl.program_id(1)                      # output-column tile index
    _, d_pad = x_ref.shape
    tn = o_ref.shape[-1]

    # LayerNorm once per row tile; cached in VMEM scratch across column tiles.
    @pl.when(j == 0)
    def _():
        x = x_ref[...].astype(jnp.float32)
        mean = jnp.sum(x, axis=-1, keepdims=True) * (1.0 / d_real)
        diff = x - mean
        ssq = jnp.sum(diff * diff, axis=-1, keepdims=True)
        if d_pad != d_real:
            # Padded lanes of x are zero, so their diff is exactly -mean: remove their
            # contribution in closed form (no iota/compare/select full-tile ops).
            ssq = ssq - float(d_pad - d_real) * (mean * mean)
        std = jnp.sqrt(ssq * (1.0 / (d_real - 1)))          # torch unbiased std (N-1)
        # divide -> EUP reciprocal; scalar alpha folded into the per-row scale.
        scale = alpha_ref[0] * pl.reciprocal(std + eps, approx=True)
        ln_ref[...] = (diff * scale).astype(jnp.bfloat16)   # beta folded into bias

    # sublayer Linear(d_model -> d_model): bf16 operands on the MXU, f32 accumulation.
    y = jnp.dot(ln_ref[...], w_ref[...], preferred_element_type=jnp.float32)

    # residual add + effective bias (beta folded in); dropout is identity (eval).
    if tn == d_pad:
        x_cols = x_ref[...]
    else:
        col0 = pl.multiple_of(j * tn, 128)
        x_cols = x_ref[:, pl.ds(col0, tn)]
    o_ref[...] = (x_cols.astype(jnp.float32) + y + beff_ref[...]).astype(o_ref.dtype)


def residual_connection(x, alpha, beta, w, b, *, eps=1e-6):
    """x: (batch, seq, d_model). Returns x + Linear(LayerNorm(x)), same shape/dtype."""
    batch, seq, d = x.shape
    assert d >= 2, "unbiased (N-1) std requires d_model >= 2"
    m = batch * seq
    d_pad = _round_up(d, 128)               # lane-dense output: unmasked vector stores

    budget = _vmem_budget_bytes()
    tm, tn = _select_tiling(m, d_pad, budget)
    m_pad = _round_up(m, tm)
    n_row_tiles = m_pad // tm
    n_col_tiles = d_pad // tn

    x2 = x.reshape(m, d)
    if (m_pad, d_pad) != (m, d):
        # Padded rows are all-zero: their LN diff is exactly 0, so the ~alpha/eps scale
        # there is harmless; padded rows/lanes never reach the real output (sliced off).
        x2 = jnp.pad(x2, ((0, m_pad - m), (0, d_pad - d)))

    # Fold beta into an effective bias (f32, before W's bf16 cast):
    #   (alpha*LN0 + beta) @ W + b  ==  alpha*LN0 @ W + (beta * W.sum(0) + b)
    b_eff = (b.astype(jnp.float32)
             + beta.astype(jnp.float32)[0] * jnp.sum(w.astype(jnp.float32), axis=0))
    b_eff = b_eff.reshape(1, d)
    w2 = w
    if d_pad != d:
        w2 = jnp.pad(w2, ((0, d_pad - d), (0, d_pad - d)))
        b_eff = jnp.pad(b_eff, ((0, 0), (0, d_pad - d)))
    w2 = w2.astype(jnp.bfloat16)            # halves W HBM/VMEM bytes; f32 accumulation in-kernel

    # Constant-index W/bias (single column tile) -> single-buffer them (halves VMEM).
    w_pipe = {"pipeline_mode": pl.Buffered(1)} if n_col_tiles == 1 else {}

    flops = 2 * m_pad * d_pad * d_pad + 8 * m_pad * d_pad
    w_bytes = d_pad * d_pad * 2 * (n_row_tiles if n_col_tiles > 1 else 1)
    bytes_accessed = 2 * m_pad * d_pad * x.dtype.itemsize + w_bytes + d_pad * 4
    cost = pl.CostEstimate(flops=flops, transcendentals=2 * m_pad,
                           bytes_accessed=bytes_accessed)

    out = pl.pallas_call(
        functools.partial(_residual_kernel, eps=eps, d_real=d),
        out_shape=jax.ShapeDtypeStruct((m_pad, d_pad), x.dtype),
        grid_spec=pltpu.PrefetchScalarGridSpec(
            num_scalar_prefetch=0,
            grid=(n_row_tiles, n_col_tiles),
            in_specs=[
                pl.BlockSpec(memory_space=pltpu.MemorySpace.SMEM),         # alpha (1,)
                pl.BlockSpec((tm, d_pad), lambda i, j: (i, 0)),            # x rows (resident over j)
                pl.BlockSpec((d_pad, tn), lambda i, j: (0, j), **w_pipe),  # W column slab (bf16)
                pl.BlockSpec((1, tn), lambda i, j: (0, j), **w_pipe),      # effective bias (f32)
            ],
            out_specs=pl.BlockSpec((tm, tn), lambda i, j: (i, j)),
            scratch_shapes=[pltpu.VMEM((tm, d_pad), jnp.bfloat16)],        # cached LN(x)
        ),
        compiler_params=pltpu.CompilerParams(
            dimension_semantics=("parallel", "arbitrary"),
            vmem_limit_bytes=budget),
        cost_estimate=cost,
    )(alpha, x2, w2, b_eff)

    return out[:m, :d].reshape(batch, seq, d)


def _reference(x, alpha, beta, w, b, eps=1e-6):
    mean = jnp.mean(x, axis=-1, keepdims=True)
    std = jnp.std(x, axis=-1, keepdims=True, ddof=1)   # torch default: unbiased
    ln = alpha[0] * (x - mean) / (std + eps) + beta[0]
    y = jnp.einsum("bsd,de->bse", ln, w) + b
    return x + y                                        # dropout eval-mode identity


if __name__ == "__main__":
    batch, seq, d_model = 2, 8, 32
    key = jax.random.PRNGKey(0)
    kx, kw, kb = jax.random.split(key, 3)

    x = jax.random.normal(kx, (batch, seq, d_model), dtype=jnp.float32)

    # Parameters, initialized deterministically (module __init__ semantics):
    alpha = jnp.ones((1,), dtype=jnp.float32)    # LayerNormalization.alpha
    beta = jnp.zeros((1,), dtype=jnp.float32)    # LayerNormalization.bias
    # Synthetic sublayer (Linear d_model -> d_model):
    w = jax.random.normal(kw, (d_model, d_model), dtype=jnp.float32) * 0.05
    b = jax.random.normal(kb, (d_model,), dtype=jnp.float32) * 0.05

    out = residual_connection(x, alpha, beta, w, b)
    out = jax.block_until_ready(out)

    ref = _reference(x, alpha, beta, w, b)
    assert out.shape == (batch, seq, d_model)
    # Looser tolerance: bf16 matmul operands + approximate EUP reciprocal.
    assert jnp.allclose(out, ref, atol=2e-2, rtol=2e-2), "mismatch vs reference"

    print("KERNEL_OK")
</pallas_src>

<mosaic_0001>
module attributes {stable_mosaic.version = 11 : i64} {
  func.func @_residual_kernel(%arg0: i32, %arg1: i32, %arg2: memref<1xf32, #tpu.memory_space<smem>>, %arg3: memref<16x128xf32, #tpu.memory_space<vmem>>, %arg4: memref<128x128xbf16, #tpu.memory_space<vmem>>, %arg5: memref<1x128xf32, #tpu.memory_space<vmem>>, %arg6: memref<16x128xf32, #tpu.memory_space<vmem>>, %arg7: memref<16x128xbf16, #tpu.memory_space<vmem>>) attributes {dimension_semantics = [#tpu.dimension_semantics<parallel>, #tpu.dimension_semantics<arbitrary>], iteration_bounds = array<i64: 1, 1>, scalar_prefetch = 0 : i64, scratch_operands = 1 : i64, tpu.core_type = #tpu.core_type<tc>, window_params = [{transform_indices = @transform_0, window_bounds = array<i64: 1>}, {transform_indices = @transform_1, window_bounds = array<i64: 16, 128>}, {pipeline_mode = #tpu.pipeline_mode<synchronous>, transform_indices = @transform_2, window_bounds = array<i64: 128, 128>}, {pipeline_mode = #tpu.pipeline_mode<synchronous>, transform_indices = @transform_3, window_bounds = array<i64: 1, 128>}, {transform_indices = @transform_4, window_bounds = array<i64: 16, 128>}]} {
    %c0_i32 = arith.constant 0 : i32
    %0 = arith.cmpi eq, %arg1, %c0_i32 : i32
    %1 = arith.extui %0 : i1 to i32
    %c0_i32_0 = arith.constant 0 : i32
    %2 = arith.cmpi ne, %1, %c0_i32_0 : i32
    scf.if %2 {
      %c0_10 = arith.constant 0 : index
      %c0_11 = arith.constant 0 : index
      %12 = vector.load %arg3[%c0_10, %c0_11] : memref<16x128xf32, #tpu.memory_space<vmem>>, vector<16x128xf32>
      %cst_12 = arith.constant dense<0.000000e+00> : vector<16xf32>
      %13 = vector.multi_reduction <add>, %12, %cst_12 [1] : vector<16x128xf32> to vector<16xf32>
      %14 = vector.shape_cast %13 : vector<16xf32> to vector<16x1xf32>
      %cst_13 = arith.constant 3.125000e-02 : f32
      %15 = vector.broadcast %cst_13 : f32 to vector<16x1xf32>
      %16 = arith.mulf %14, %15 : vector<16x1xf32>
      %17 = vector.broadcast %16 : vector<16x1xf32> to vector<16x128xf32>
      %18 = arith.subf %12, %17 : vector<16x128xf32>
      %19 = arith.mulf %18, %18 : vector<16x128xf32>
      %cst_14 = arith.constant dense<0.000000e+00> : vector<16xf32>
      %20 = vector.multi_reduction <add>, %19, %cst_14 [1] : vector<16x128xf32> to vector<16xf32>
      %21 = vector.shape_cast %20 : vector<16xf32> to vector<16x1xf32>
      %22 = arith.mulf %16, %16 : vector<16x1xf32>
      %cst_15 = arith.constant 9.600000e+01 : f32
      %23 = vector.broadcast %cst_15 : f32 to vector<16x1xf32>
      %24 = arith.mulf %23, %22 : vector<16x1xf32>
      %25 = arith.subf %21, %24 : vector<16x1xf32>
      %cst_16 = arith.constant 0.0322580636 : f32
      %26 = vector.broadcast %cst_16 : f32 to vector<16x1xf32>
      %27 = arith.mulf %25, %26 : vector<16x1xf32>
      %28 = math.sqrt %27 : vector<16x1xf32>
      %c0_17 = arith.constant 0 : index
      %29 = memref.load %arg2[%c0_17] : memref<1xf32, #tpu.memory_space<smem>>
      %cst_18 = arith.constant 9.99999997E-7 : f32
      %30 = vector.broadcast %cst_18 : f32 to vector<16x1xf32>
      %31 = arith.addf %28, %30 : vector<16x1xf32>
      %32 = tpu.reciprocal %31 {approx = true} : vector<16x1xf32> -> vector<16x1xf32>
      %33 = vector.broadcast %29 : f32 to vector<16x1xf32>
      %34 = arith.mulf %33, %32 : vector<16x1xf32>
      %35 = vector.broadcast %34 : vector<16x1xf32> to vector<16x128xf32>
      %36 = arith.mulf %18, %35 : vector<16x128xf32>
      %37 = arith.truncf %36 : vector<16x128xf32> to vector<16x128xbf16>
      %c0_19 = arith.constant 0 : index
      %c0_20 = arith.constant 0 : index
      %38 = vector.load %arg7[%c0_19, %c0_20] : memref<16x128xbf16, #tpu.memory_space<vmem>>, vector<16x128xbf16>
      tpu.vector_store %arg7[%c0_19, %c0_20], %37 {strides = array<i32>} : memref<16x128xbf16, #tpu.memory_space<vmem>>, vector<16x128xbf16>,
    } else {
    }
    %c0 = arith.constant 0 : index
    %c0_1 = arith.constant 0 : index
    %3 = vector.load %arg7[%c0, %c0_1] : memref<16x128xbf16, #tpu.memory_space<vmem>>, vector<16x128xbf16>
    %c0_2 = arith.constant 0 : index
    %c0_3 = arith.constant 0 : index
    %4 = vector.load %arg4[%c0_2, %c0_3] : memref<128x128xbf16, #tpu.memory_space<vmem>>, vector<128x128xbf16>
    %cst = arith.constant dense<0.000000e+00> : vector<16x128xf32>
    %5 = tpu.matmul %3, %4, %cst {dimension_numbers = #tpu.dot_dimension_numbers<[1], [0], [0], [1], [0, 0, 1, 1], [], []>} : vector<16x128xbf16>, vector<128x128xbf16>, vector<16x128xf32> -> vector<16x128xf32>
    %c0_4 = arith.constant 0 : index
    %c0_5 = arith.constant 0 : index
    %6 = vector.load %arg3[%c0_4, %c0_5] : memref<16x128xf32, #tpu.memory_space<vmem>>, vector<16x128xf32>
    %7 = arith.addf %6, %5 : vector<16x128xf32>
    %c0_6 = arith.constant 0 : index
    %c0_7 = arith.constant 0 : index
    %8 = vector.load %arg5[%c0_6, %c0_7] : memref<1x128xf32, #tpu.memory_space<vmem>>, vector<1x128xf32>
    %9 = vector.broadcast %8 : vector<1x128xf32> to vector<16x128xf32>
    %10 = arith.addf %7, %9 : vector<16x128xf32>
    %c0_8 = arith.constant 0 : index
    %c0_9 = arith.constant 0 : index
    %11 = vector.load %arg6[%c0_8, %c0_9] : memref<16x128xf32, #tpu.memory_space<vmem>>, vector<16x128xf32>
    tpu.vector_store %arg6[%c0_8, %c0_9], %10 {strides = array<i32>} : memref<16x128xf32, #tpu.memory_space<vmem>>, vector<16x128xf32>,
    return
  }
  func.func @transform_0(%arg0: i32, %arg1: i32) -> i32 {
    %c0_i32 = arith.constant 0 : i32
    %c0_i32_0 = arith.constant 0 : i32
    return %c0_i32 : i32
  }
  func.func @transform_1(%arg0: i32, %arg1: i32) -> (i32, i32) {
    %c0_i32 = arith.constant 0 : i32
    %c0_i32_0 = arith.constant 0 : i32
    return %arg0, %c0_i32 : i32, i32
  }
  func.func @transform_2(%arg0: i32, %arg1: i32) -> (i32, i32) {
    %c0_i32 = arith.constant 0 : i32
    %c0_i32_0 = arith.constant 0 : i32
    return %c0_i32, %arg1 : i32, i32
  }
  func.func @transform_3(%arg0: i32, %arg1: i32) -> (i32, i32) {
    %c0_i32 = arith.constant 0 : i32
    %c0_i32_0 = arith.constant 0 : i32
    return %c0_i32, %arg1 : i32, i32
  }
  func.func @transform_4(%arg0: i32, %arg1: i32) -> (i32, i32) {
    %c0_i32 = arith.constant 0 : i32
    return %arg0, %arg1 : i32, i32
  }
}

</mosaic_0001>

<llo_original>
// kernel: tpu_custom_call.1
$region0: #{tpu_custom_call.1}
  #allocation0 [shape = 'u32[]', space=smem, size = 0x4, offset = 0x4, fixed_abs, tag = 'smem constant byte address 0x4 - core index']
  #allocation1 [shape = 'u32[72,128]{1,0:T(1,128)}', space=vmem, size = 0x9000, scoped, tag = 'internal scratch']
  #allocation2 [shape = 'bf16[16,128]{1,0:T(8,128)(2,1)}', space=vmem, size = 0x1000, scoped, tag = 'scratch operand']
  #allocation3 [shape = 'f32[1]{0:T(128)S(6)}', space=smem, size = 0x200, scoped, tag = 'scoped memory for tpu_custom_call.1']
  %s0 = inlined_call_operand.<no memory space> [shape: f32[1], index: 0, kind: input, shape index: {}]
  %s1 = inlined_call_operand.hbm [shape: f32[16,128], index: 1, kind: input, shape index: {}]
  %s2 = inlined_call_operand.hbm [shape: bf16[128,128], index: 2, kind: input, shape index: {}]
  %s3 = inlined_call_operand.vmem [shape: f32[1,128], index: 3, kind: input, shape index: {}]
  %s4 = inlined_call_operand.hbm [shape: f32[16,128], index: 4, kind: output, shape index: {}]
  %s5 = sld [smem:[#allocation0]]
  $region38: #{tpu_custom_call.1} parent=0
    _
  %s7 = ssub.s32 1, %s5
  %s8 = scalar_select 0, %s7, %s5
  %9 = sst [smem:[#allocation3]] %s0
  $region1: #{tpu_custom_call.1} parent=0
    #allocation4 [shape = 'u8[8192]{0}', space=vmem, size = 0x2000, scoped, tag = 'input window, operand 1, single buffered']
    #allocation5 [shape = 's32[1]{0}', space=sflag, size = 0x4, scoped, tag = 'scoped memory for tpu_custom_call.1']
    #allocation6 [shape = 's32[1]{0}', space=sflag, size = 0x4, scoped, tag = 'scoped memory for tpu_custom_call.1']
    #allocation7 [shape = 'u8[32768]{0}', space=vmem, size = 0x8000, scoped, tag = 'input window, operand 2, single buffered']
    #allocation8 [shape = 's32[1]{0}', space=sflag, size = 0x4, scoped, tag = 'scoped memory for tpu_custom_call.1']
    #allocation9 [shape = 'u8[8192]{0}', space=vmem, size = 0x2000, scoped, tag = 'output window, operand 0, single buffered']
    %10 = vsyncpa [#allocation5], 0
    %11 = vsyncpa [#allocation8], 0
    %12 = vsyncpa [#allocation6], 0
    // Predicated region
    $region2: #{tpu_custom_call.1} parent=1 // pred_check
      _
    $region3: #{tpu_custom_call.1} parent=1 // pred_check_branch
      %14 = sbr.rel (0) target = $region5
    $region4: #{tpu_custom_call.1} parent=1 // pred_region
      _
    $region5: #{tpu_custom_call.1} parent=1 // pred_fallthru
      _
    // Predicated region
    $region6: #{tpu_custom_call.1} parent=1 // pred_check
      _
    $region7: #{tpu_custom_call.1} parent=1 // pred_check_branch
      %16 = sbr.rel (0) target = $region9
    $region8: #{tpu_custom_call.1} parent=1 // pred_region
      %18 = vsyncadd [#allocation5], 0
      %s19 = sshll.u32 %s1, 4
      %s20 = int_to_ptr.hbm [resolvable:$true] %s19
      %s21 = sshll.u32 [#allocation4], 4
      %s22 = int_to_ptr.vmem [resolvable:$true] %s21
      %27 = dma.hbm_to_vmem [thread:$0]  %s20, 256, %s22, [#allocation5], 128, 128, 8
    $region9: #{tpu_custom_call.1} parent=1 // pred_fallthru
      _
    // Predicated region
    $region10: #{tpu_custom_call.1} parent=1 // pred_check
      _
    $region11: #{tpu_custom_call.1} parent=1 // pred_check_branch
      %29 = sbr.rel (0) target = $region13
    $region12: #{tpu_custom_call.1} parent=1 // pred_region
      %31 = vsyncadd [#allocation8], 0
      %s32 = sshll.u32 %s2, 4
      %s33 = int_to_ptr.hbm [resolvable:$true] %s32
      %s34 = sshll.u32 [#allocation7], 4
      %s35 = int_to_ptr.vmem [resolvable:$true] %s34
      %40 = dma.hbm_to_vmem [thread:$0]  %s33, 1024, %s35, [#allocation8], 64, 64, 4
    $region13: #{tpu_custom_call.1} parent=1 // pred_fallthru
      _
    // Predicated region
    $region14: #{tpu_custom_call.1} parent=1 // pred_check
      _
    $region15: #{tpu_custom_call.1} parent=1 // pred_check_branch
      %42 = sbr.rel (0) target = $region17
    $region16: #{tpu_custom_call.1} parent=1 // pred_region
      _
    $region17: #{tpu_custom_call.1} parent=1 // pred_fallthru
      _
    // Predicated region
    $region18: #{tpu_custom_call.1} parent=1 // pred_check
      _
    $region19: #{tpu_custom_call.1} parent=1 // pred_check_branch
      %44 = sbr.rel (0) target = $region21
    $region20: #{tpu_custom_call.1} parent=1 // pred_region
      %46 = dma.done [#allocation5], 256
    $region21: #{tpu_custom_call.1} parent=1 // pred_fallthru
      _
    // Predicated region
    $region22: #{tpu_custom_call.1} parent=1 // pred_check
      _
    $region23: #{tpu_custom_call.1} parent=1 // pred_check_branch
      %48 = sbr.rel (0) target = $region25
    $region24: #{tpu_custom_call.1} parent=1 // pred_region
      %50 = dma.done [#allocation8], 1024
    $region25: #{tpu_custom_call.1} parent=1 // pred_fallthru
      _
    %p51 = scmp.eq.s32.totalorder 0, 0
    // Predicated region
    $region26: #{tpu_custom_call.1} parent=1 // pred_check
      %p52 = pneg %p51
    $region27: #{tpu_custom_call.1} parent=1 // pred_check_branch
      %54 = sbr.rel (%p52) target = $region29
    $region28: #{tpu_custom_call.1} parent=1 // pred_region
      %v55 = vld [vmem:[#allocation4] sm:$0xff]
      %v56 = vld [vmem:[#allocation4 + $0x8] sm:$0xff]
      %57 = vadd.xlane.f32.xlu0 %v55
      %v58 = vpop.xlane.xlu0 %57
      %59 = vadd.xlane.f32.xlu0 %v56
      %v60 = vpop.xlane.xlu0 %59
      %v61 = vmul.f32 %v58, 0.03125
      %v62 = vmul.f32 %v60, 0.03125
      %v63 = vsub.f32 %v55, %v61
      %v64 = vsub.f32 %v56, %v62
      %v65 = vmul.f32 %v63, %v63
      %v66 = vmul.f32 %v64, %v64
      %67 = vadd.xlane.f32.xlu0 %v65
      %v68 = vpop.xlane.xlu0 %67
      %69 = vadd.xlane.f32.xlu0 %v66
      %v70 = vpop.xlane.xlu0 %69
      %v71 = vmul.f32 %v61, %v61
      %v72 = vmul.f32 %v62, %v62
      %v73 = vmul.f32 %v71, 96.0
      %v74 = vmul.f32 %v72, 96.0
      %v75 = vsub.f32 %v68, %v73
      %v76 = vsub.f32 %v70, %v74
      %v77 = vmul.f32 %v75, 0.032258064
      %v78 = vmul.f32 %v76, 0.032258064
      %v79 = vrsqrt.pop %v77
      %v80 = vmul.f32 %v79, %v77
      %v81 = vmul.f32 %v80, %v79
      %v82 = vmul.f32 0.5, %v81
      %v83 = vsub.f32 1.5, %v82
      %v84 = vmul.f32 %v79, %v83
      %v85 = vmul.f32 %v77, %v84
      %vm86 = vcmp.eq.f32.partialorder %v77, inf
      %v87 = vsel %vm86, %v77, %v85
      %vm88 = vcmp.eq.f32.partialorder %v77, 0.0
      %v89 = vand.u32 %v77, 2147483648
      %v90 = vsel %vm88, %v89, %v87
      %v91 = vrsqrt.pop %v78
      %v92 = vmul.f32 %v91, %v78
      %v93 = vmul.f32 %v92, %v91
      %v94 = vmul.f32 0.5, %v93
      %v95 = vsub.f32 1.5, %v94
      %v96 = vmul.f32 %v91, %v95
      %v97 = vmul.f32 %v78, %v96
      %vm98 = vcmp.eq.f32.partialorder %v78, inf
      %v99 = vsel %vm98, %v78, %v97
      %vm100 = vcmp.eq.f32.partialorder %v78, 0.0
      %v101 = vand.u32 %v78, 2147483648
      %v102 = vsel %vm100, %v101, %v99
      %s103 = sld [smem:[#allocation3]]
      %v104 = vadd.f32 %v90, 1e-06
      %v105 = vadd.f32 %v102, 1e-06
      %v106 = vrcp.pop %v104
      %v107 = vrcp.pop %v105
      %v108 = vstv %s103
      %v109 = vmul.f32 %v108, %v106
      %v110 = vmul.f32 %v108, %v107
      %v111 = vmul.f32 %v63, %v109
      %v112 = vmul.f32 %v64, %v110
      %v113 = vpack.c.bf16 %v111, %v111
      %v114 = vpack.c.bf16 %v112, %v112
      %115 = vst [vmem:[#allocation2] sm:$0xf] %v113
      %116 = vst [vmem:[#allocation2 + $0x4] sm:$0xf] %v114
    $region29: #{tpu_custom_call.1} parent=1 // pred_fallthru
      _
    %v117 = vld [vmem:[#allocation2] sm:$0xf]
    %v118 = vld [vmem:[#allocation2 + $0x4] sm:$0xf]
    %v119 = vld [vmem:[#allocation7] sm:$0xf]
    %v120 = vld [vmem:[#allocation7 + $0x4] sm:$0xf]
    %v121 = vld [vmem:[#allocation7 + $0x8] sm:$0xf]
    %v122 = vld [vmem:[#allocation7 + $0xc] sm:$0xf]
    %v123 = vld [vmem:[#allocation7 + $0x10] sm:$0xf]
    %v124 = vld [vmem:[#allocation7 + $0x14] sm:$0xf]
    %v125 = vld [vmem:[#allocation7 + $0x18] sm:$0xf]
    %v126 = vld [vmem:[#allocation7 + $0x1c] sm:$0xf]
    %v127 = vld [vmem:[#allocation7 + $0x20] sm:$0xf]
    %v128 = vld [vmem:[#allocation7 + $0x24] sm:$0xf]
    %v129 = vld [vmem:[#allocation7 + $0x28] sm:$0xf]
    %v130 = vld [vmem:[#allocation7 + $0x2c] sm:$0xf]
    %v131 = vld [vmem:[#allocation7 + $0x30] sm:$0xf]
    %v132 = vld [vmem:[#allocation7 + $0x34] sm:$0xf]
    %v133 = vld [vmem:[#allocation7 + $0x38] sm:$0xf]
    %v134 = vld [vmem:[#allocation7 + $0x3c] sm:$0xf]
    %v137 = vunpack.c.l.b16 %v117
    %v138 = vunpack.c.l.b16 %v118
    %v139 = vpack.c.b16 %v138, %v137
    %v157 = vunpack.c.l.b16 %v119
    %v158 = vunpack.c.l.b16 %v120
    %v159 = vunpack.c.l.b16 %v121
    %v160 = vunpack.c.l.b16 %v122
    %v161 = vunpack.c.l.b16 %v123
    %v162 = vunpack.c.l.b16 %v124
    %v163 = vunpack.c.l.b16 %v125
    %v164 = vunpack.c.l.b16 %v126
    %v165 = vunpack.c.l.b16 %v127
    %v166 = vunpack.c.l.b16 %v128
    %v167 = vunpack.c.l.b16 %v129
    %v168 = vunpack.c.l.b16 %v130
    %v169 = vunpack.c.l.b16 %v131
    %v170 = vunpack.c.l.b16 %v132
    %v171 = vunpack.c.l.b16 %v133
    %v172 = vunpack.c.l.b16 %v134
    %v173 = vpack.c.b16 %v158, %v157
    %v174 = vpack.c.b16 %v160, %v159
    %v175 = vpack.c.b16 %v162, %v161
    %v176 = vpack.c.b16 %v164, %v163
    %v177 = vpack.c.b16 %v166, %v165
    %v178 = vpack.c.b16 %v168, %v167
    %v179 = vpack.c.b16 %v170, %v169
    %v180 = vpack.c.b16 %v172, %v171
    %189 = vmatpush.bf16.msra.mxu0 %v180
    %190 = vmatpush.bf16.msra.mxu0 %v179
    %191 = vmatpush.bf16.msra.mxu0 %v178
    %192 = vmatpush.bf16.msra.mxu0 %v177
    %193 = vmatpush.bf16.msra.mxu0 %v176
    %194 = vmatpush.bf16.msra.mxu0 %v175
    %195 = vmatpush.bf16.msra.mxu0 %v174
    %196 = vmatpush.bf16.msra.mxu0 %v173
    %197 = vmatmul.bf16.gmra.mxu0 %v139
    %v198 = vpop.f32.mrf.mxu0
    %v199 = vadd.f32 0.0, %v198
    %v200 = vpop.f32.mrf.mxu0
    %v201 = vadd.f32 0.0, %v200
    %202 = vdwg.mxu0
    %v203 = vld [vmem:[#allocation4] sm:$0xff]
    %v204 = vld [vmem:[#allocation4 + $0x8] sm:$0xff]
    %v205 = vadd.f32 %v203, %v199
    %v206 = vadd.f32 %v204, %v201
    %v207 = vld [vmem:[%s3] sm:$0x1]
    %v209 = vperm.slane %v207, 0
    %v211 = vadd.f32 %v205, %v209
    %v212 = vadd.f32 %v206, %v209
    %213 = vst [vmem:[#allocation9] sm:$0xff] %v211
    %214 = vst [vmem:[#allocation9 + $0x8] sm:$0xff] %v212
    // Predicated region
    $region30: #{tpu_custom_call.1} parent=1 // pred_check
      _
    $region31: #{tpu_custom_call.1} parent=1 // pred_check_branch
      %216 = sbr.rel (0) target = $region33
    $region32: #{tpu_custom_call.1} parent=1 // pred_region
      %218 = vsyncadd [#allocation6], 0
      %s219 = sshll.u32 [#allocation9], 4
      %s220 = int_to_ptr.vmem [resolvable:$true] %s219
      %s221 = sshll.u32 %s4, 4
      %s222 = int_to_ptr.hbm [resolvable:$true] %s221
      %227 = dma.vmem_to_hbm [thread:$0]  %s220, 256, %s222, [#allocation6], 128, 128, 8
    $region33: #{tpu_custom_call.1} parent=1 // pred_fallthru
      _
    // Predicated region
    $region34: #{tpu_custom_call.1} parent=1 // pred_check
      _
    $region35: #{tpu_custom_call.1} parent=1 // pred_check_branch
      %229 = sbr.rel (0) target = $region37
    $region36: #{tpu_custom_call.1} parent=1 // pred_region
      %231 = dma.done [#allocation6], 256
    $region37: #{tpu_custom_call.1} parent=1 // pred_fallthru
      _
    %232 = vsyncpa [#allocation5], 1
    %233 = vsyncpa [#allocation8], 1
    %234 = vsyncpa [#allocation6], 1

</llo_original>
